<compile_context>
chip_gen: v7x
topology: tpu7x:2x2x1
jax: 0.10.0
libtpu: 0.0.40
codegen_flags: <defaults>
</compile_context>

<pallas_src>
import functools

import jax
import jax.numpy as jnp
from jax.experimental import pallas as pl
from jax.experimental.pallas import tpu as pltpu


def h_att_kernel(hist_ref, ques_ref, wh_ref, bh_ref, wq_ref, bq_ref,
                 watt_ref, feat_ref, h_sc, q_sc):
    TB, R, H2 = hist_ref.shape
    H = H2 // 2

    # Grid-invariant weights: constant index_map keeps the DMA identical every
    # step, so they stay resident in VMEM in steady state.
    wh = wh_ref[...]          # (2H, 2H)  [Wy_h | Wg_h]
    bh = bh_ref[...]          # (1, 2H)
    wq = wq_ref[...]          # (2H, 2H)  [Wy_q | Wg_q]
    bq = bq_ref[...]          # (1, 2H)
    watt = watt_ref[...]      # (1, H)

    # Causal (tril) mask over history rounds: j <= i.  Hoisted out of loops.
    row = jax.lax.broadcasted_iota(jnp.int32, (R, R), 0)
    col = jax.lax.broadcasted_iota(jnp.int32, (R, R), 1)
    mask = (col <= row)[None, :, :]                               # (1, R, R)

    # ---- fused GatedTrans per batch row (small 2-D matmuls, static unroll) --
    for t in range(TB):
        hz = jnp.dot(hist_ref[t], wh, preferred_element_type=jnp.float32) + bh
        qz = jnp.dot(ques_ref[t], wq, preferred_element_type=jnp.float32) + bq
        h_sc[t] = jnp.tanh(hz[:, :H]) * jax.nn.sigmoid(hz[:, H:])   # (R, H)
        q_sc[t] = jnp.tanh(qz[:, :H]) * jax.nn.sigmoid(qz[:, H:])   # (R, H)

    h_emb = h_sc[...]          # (TB, R, H)
    q_emb = q_sc[...]          # (TB, R, H)

    # ---- pairwise normalized logits without an (R, R, H) intermediate ------
    num = jnp.einsum('brh,bsh->brs', q_emb * watt, h_emb,
                     preferred_element_type=jnp.float32)            # (TB, R, R)
    den2 = jnp.einsum('brh,bsh->brs', q_emb * q_emb, h_emb * h_emb,
                      preferred_element_type=jnp.float32)           # (TB, R, R)
    logits = num * jax.lax.rsqrt(jnp.maximum(den2, 1e-24))
    # batt dropped: constant logit shift, invariant under softmax.

    # ---- single masked softmax over history rounds --------------------------
    m = jnp.max(jnp.where(mask, logits, -jnp.inf), axis=-1, keepdims=True)
    p = jnp.where(mask, jnp.exp(logits - m), 0.0)                   # (TB, R, R)
    denom = jnp.sum(p, axis=-1, keepdims=True)                      # >0 (diag valid)
    att = p * pl.reciprocal(denom, approx=False)

    # ---- attended history feature (weighted sum of raw hist rows) -----------
    feat = jnp.einsum('brs,bsd->brd', att, hist_ref[...],
                      preferred_element_type=jnp.float32)           # (TB, R, 2H)
    feat_ref[...] = feat.astype(feat_ref.dtype)


@functools.partial(jax.jit, static_argnames=("block_b",))
def h_att_forward(hist, ques, params, *, block_b=8):
    """hist, ques: (B, R, 2H) float32.  Returns feat: (B, R, 2H)."""
    B, R, H2 = hist.shape
    H = H2 // 2

    tb = min(block_b, B)
    nb = pl.cdiv(B, tb)
    Bp = nb * tb

    hist_f = hist.astype(jnp.float32)
    ques_f = ques.astype(jnp.float32)
    if Bp != B:
        pad = ((0, Bp - B), (0, 0), (0, 0))
        hist_f = jnp.pad(hist_f, pad)   # zero rows -> finite, discarded output
        ques_f = jnp.pad(ques_f, pad)

    # TODO(synk): for production sizes, cast hist/ques/weights to bfloat16 for
    # HBM traffic (kernel is bandwidth-bound); kept f32 here to match the f32
    # reference within tight tolerances.

    feat = pl.pallas_call(
        h_att_kernel,
        out_shape=jax.ShapeDtypeStruct((Bp, R, H2), jnp.float32),
        grid_spec=pltpu.PrefetchScalarGridSpec(
            num_scalar_prefetch=0,
            grid=(nb,),
            in_specs=[
                pl.BlockSpec((tb, R, H2), lambda b: (b, 0, 0)),   # hist block
                pl.BlockSpec((tb, R, H2), lambda b: (b, 0, 0)),   # ques block
                pl.BlockSpec((H2, H2), lambda b: (0, 0)),         # Wh fused
                pl.BlockSpec((1, H2), lambda b: (0, 0)),          # bh fused
                pl.BlockSpec((H2, H2), lambda b: (0, 0)),         # Wq fused
                pl.BlockSpec((1, H2), lambda b: (0, 0)),          # bq fused
                pl.BlockSpec((1, H), lambda b: (0, 0)),           # watt row
            ],
            out_specs=pl.BlockSpec((tb, R, H2), lambda b: (b, 0, 0)),
            scratch_shapes=[
                pltpu.VMEM((tb, R, H), jnp.float32),   # h_emb block
                pltpu.VMEM((tb, R, H), jnp.float32),   # q_emb block
            ],
        ),
        compiler_params=pltpu.CompilerParams(
            dimension_semantics=("parallel",)),
    )(hist_f, ques_f,
      params["wh"], params["bh"], params["wq"], params["bq"], params["watt"])

    return feat[:B]


def init_params(key, lstm_size):
    """Kaiming-uniform weights (bias=0), stored (in, out); Wy/Wg fused along out."""
    in_dim = lstm_size * 2
    H = lstm_size
    k1, k2, k3, k4, k5 = jax.random.split(key, 5)

    def kaiming_uniform(k, fan_in, shape):
        bound = jnp.sqrt(6.0 / fan_in)
        return jax.random.uniform(k, shape, jnp.float32, -bound, bound)

    wy_h = kaiming_uniform(k1, in_dim, (in_dim, H))
    wg_h = kaiming_uniform(k2, in_dim, (in_dim, H))
    wy_q = kaiming_uniform(k3, in_dim, (in_dim, H))
    wg_q = kaiming_uniform(k4, in_dim, (in_dim, H))
    watt = kaiming_uniform(k5, H, (H, 1))

    return {
        "wh": jnp.concatenate([wy_h, wg_h], axis=1),   # (2H, 2H)
        "bh": jnp.zeros((1, 2 * H), jnp.float32),
        "wq": jnp.concatenate([wy_q, wg_q], axis=1),   # (2H, 2H)
        "bq": jnp.zeros((1, 2 * H), jnp.float32),
        "watt": watt.T,                                # (1, H) row vector
        "batt": jnp.zeros((), jnp.float32),            # dead under softmax
    }


def h_att_reference(hist, ques, params):
    """Pure-JAX replica of the PyTorch H_ATT forward (eval mode)."""
    hist = hist.astype(jnp.float32)
    ques = ques.astype(jnp.float32)
    H = params["watt"].shape[1]
    B, R, _ = hist.shape

    def gated(x, w, b):
        z = x @ w + b[0]
        return jnp.tanh(z[..., :H]) * jax.nn.sigmoid(z[..., H:])

    h_emb = gated(hist, params["wh"], params["bh"])      # (B, R, H)
    q_emb = gated(ques, params["wq"], params["bq"])      # (B, R, H)

    e = q_emb[:, :, None, :] * h_emb[:, None, :, :]      # (B, R, R, H)
    nrm = jnp.linalg.norm(e, axis=-1, keepdims=True)
    e_n = e / jnp.maximum(nrm, 1e-12)
    logits = jnp.sum(e_n * params["watt"][0], axis=-1) + params["batt"]
    att = jax.nn.softmax(logits, axis=-1)
    tril = jnp.tril(jnp.ones((R, R), jnp.float32))
    att_m = att * tril
    att_m = att_m / jnp.sum(att_m, axis=-1, keepdims=True)
    feat = jnp.sum(att_m[..., None] * hist[:, None, :, :], axis=-2)
    return feat


if __name__ == "__main__":
    B, R = 2, 10           # batch, num_rounds
    lstm_size = 16         # H; inputs are 2H = 32 wide

    key = jax.random.PRNGKey(0)
    k_hist, k_ques, k_params = jax.random.split(key, 3)

    hist = jax.random.normal(k_hist, (B, R, 2 * lstm_size), jnp.float32)
    ques = jax.random.normal(k_ques, (B, R, 2 * lstm_size), jnp.float32)
    params = init_params(k_params, lstm_size)

    feat = h_att_forward(hist, ques, params)
    jax.block_until_ready(feat)

    feat_ref = h_att_reference(hist, ques, params)
    assert feat.shape == (B, R, 2 * lstm_size)
    assert jnp.allclose(feat, feat_ref, atol=1e-4, rtol=1e-4), \
        float(jnp.max(jnp.abs(feat - feat_ref)))

    print("KERNEL_OK")
</pallas_src>

<mosaic_0001>
module attributes {stable_mosaic.version = 11 : i64} {
  func.func @h_att_kernel(%arg0: i32, %arg1: memref<2x10x32xf32, #tpu.memory_space<vmem>>, %arg2: memref<2x10x32xf32, #tpu.memory_space<vmem>>, %arg3: memref<32x32xf32, #tpu.memory_space<vmem>>, %arg4: memref<1x32xf32, #tpu.memory_space<vmem>>, %arg5: memref<32x32xf32, #tpu.memory_space<vmem>>, %arg6: memref<1x32xf32, #tpu.memory_space<vmem>>, %arg7: memref<1x16xf32, #tpu.memory_space<vmem>>, %arg8: memref<2x10x32xf32, #tpu.memory_space<vmem>>, %arg9: memref<2x10x16xf32, #tpu.memory_space<vmem>>, %arg10: memref<2x10x16xf32, #tpu.memory_space<vmem>>) attributes {dimension_semantics = [#tpu.dimension_semantics<parallel>], iteration_bounds = array<i64: 1>, scalar_prefetch = 0 : i64, scratch_operands = 2 : i64, tpu.core_type = #tpu.core_type<tc>, window_params = [{transform_indices = @transform_0, window_bounds = array<i64: 2, 10, 32>}, {transform_indices = @transform_1, window_bounds = array<i64: 2, 10, 32>}, {pipeline_mode = #tpu.pipeline_mode<synchronous>, transform_indices = @transform_2, window_bounds = array<i64: 32, 32>}, {pipeline_mode = #tpu.pipeline_mode<synchronous>, transform_indices = @transform_3, window_bounds = array<i64: 1, 32>}, {pipeline_mode = #tpu.pipeline_mode<synchronous>, transform_indices = @transform_4, window_bounds = array<i64: 32, 32>}, {pipeline_mode = #tpu.pipeline_mode<synchronous>, transform_indices = @transform_5, window_bounds = array<i64: 1, 32>}, {pipeline_mode = #tpu.pipeline_mode<synchronous>, transform_indices = @transform_6, window_bounds = array<i64: 1, 16>}, {transform_indices = @transform_7, window_bounds = array<i64: 2, 10, 32>}]} {
    %c0 = arith.constant 0 : index
    %c0_0 = arith.constant 0 : index
    %0 = vector.load %arg3[%c0, %c0_0] : memref<32x32xf32, #tpu.memory_space<vmem>>, vector<32x32xf32>
    %c0_1 = arith.constant 0 : index
    %c0_2 = arith.constant 0 : index
    %1 = vector.load %arg4[%c0_1, %c0_2] : memref<1x32xf32, #tpu.memory_space<vmem>>, vector<1x32xf32>
    %c0_3 = arith.constant 0 : index
    %c0_4 = arith.constant 0 : index
    %2 = vector.load %arg5[%c0_3, %c0_4] : memref<32x32xf32, #tpu.memory_space<vmem>>, vector<32x32xf32>
    %c0_5 = arith.constant 0 : index
    %c0_6 = arith.constant 0 : index
    %3 = vector.load %arg6[%c0_5, %c0_6] : memref<1x32xf32, #tpu.memory_space<vmem>>, vector<1x32xf32>
    %c0_7 = arith.constant 0 : index
    %c0_8 = arith.constant 0 : index
    %4 = vector.load %arg7[%c0_7, %c0_8] : memref<1x16xf32, #tpu.memory_space<vmem>>, vector<1x16xf32>
    %5 = tpu.iota {dimensions = array<i32: 0>} : vector<10x10xi32>
    %6 = tpu.iota {dimensions = array<i32: 1>} : vector<10x10xi32>
    %7 = arith.cmpi sle, %6, %5 : vector<10x10xi32>
    %8 = vector.shape_cast %7 : vector<10x10xi1> to vector<1x10x10xi1>
    %c0_9 = arith.constant 0 : index
    %c0_10 = arith.constant 0 : index
    %c0_11 = arith.constant 0 : index
    %9 = vector.load %arg1[%c0_9, %c0_10, %c0_11] : memref<2x10x32xf32, #tpu.memory_space<vmem>>, vector<1x10x32xf32>
    %10 = vector.shape_cast %9 : vector<1x10x32xf32> to vector<10x32xf32>
    %cst = arith.constant dense<0.000000e+00> : vector<10x32xf32>
    %11 = tpu.matmul %10, %0, %cst {dimension_numbers = #tpu.dot_dimension_numbers<[1], [0], [0], [1], [0, 0, 1, 1], [], []>} : vector<10x32xf32>, vector<32x32xf32>, vector<10x32xf32> -> vector<10x32xf32>
    %12 = vector.broadcast %1 : vector<1x32xf32> to vector<10x32xf32>
    %13 = arith.addf %11, %12 : vector<10x32xf32>
    %c0_12 = arith.constant 0 : index
    %c0_13 = arith.constant 0 : index
    %c0_14 = arith.constant 0 : index
    %14 = vector.load %arg2[%c0_12, %c0_13, %c0_14] : memref<2x10x32xf32, #tpu.memory_space<vmem>>, vector<1x10x32xf32>
    %15 = vector.shape_cast %14 : vector<1x10x32xf32> to vector<10x32xf32>
    %cst_15 = arith.constant dense<0.000000e+00> : vector<10x32xf32>
    %16 = tpu.matmul %15, %2, %cst_15 {dimension_numbers = #tpu.dot_dimension_numbers<[1], [0], [0], [1], [0, 0, 1, 1], [], []>} : vector<10x32xf32>, vector<32x32xf32>, vector<10x32xf32> -> vector<10x32xf32>
    %17 = vector.broadcast %3 : vector<1x32xf32> to vector<10x32xf32>
    %18 = arith.addf %16, %17 : vector<10x32xf32>
    %19 = vector.extract_strided_slice %13 {offsets = [0, 0], sizes = [10, 16], strides = [1, 1]} : vector<10x32xf32> to vector<10x16xf32>
    %20 = math.tanh %19 : vector<10x16xf32>
    %21 = vector.extract_strided_slice %13 {offsets = [0, 16], sizes = [10, 16], strides = [1, 1]} : vector<10x32xf32> to vector<10x16xf32>
    %22 = arith.negf %21 : vector<10x16xf32>
    %23 = math.exp %22 : vector<10x16xf32>
    %cst_16 = arith.constant 1.000000e+00 : f32
    %24 = vector.broadcast %cst_16 : f32 to vector<10x16xf32>
    %25 = arith.addf %24, %23 : vector<10x16xf32>
    %26 = arith.divf %24, %25 : vector<10x16xf32>
    %27 = arith.mulf %20, %26 : vector<10x16xf32>
    %c0_17 = arith.constant 0 : index
    %c0_18 = arith.constant 0 : index
    %c0_19 = arith.constant 0 : index
    %28 = vector.load %arg9[%c0_17, %c0_18, %c0_19] : memref<2x10x16xf32, #tpu.memory_space<vmem>>, vector<1x10x16xf32>
    %29 = vector.shape_cast %28 : vector<1x10x16xf32> to vector<10x16xf32>
    %30 = vector.shape_cast %27 : vector<10x16xf32> to vector<1x10x16xf32>
    tpu.vector_store %arg9[%c0_17, %c0_18, %c0_19], %30 {strides = array<i32>} : memref<2x10x16xf32, #tpu.memory_space<vmem>>, vector<1x10x16xf32>,
    %31 = vector.extract_strided_slice %18 {offsets = [0, 0], sizes = [10, 16], strides = [1, 1]} : vector<10x32xf32> to vector<10x16xf32>
    %32 = math.tanh %31 : vector<10x16xf32>
    %33 = vector.extract_strided_slice %18 {offsets = [0, 16], sizes = [10, 16], strides = [1, 1]} : vector<10x32xf32> to vector<10x16xf32>
    %34 = arith.negf %33 : vector<10x16xf32>
    %35 = math.exp %34 : vector<10x16xf32>
    %cst_20 = arith.constant 1.000000e+00 : f32
    %36 = vector.broadcast %cst_20 : f32 to vector<10x16xf32>
    %37 = arith.addf %36, %35 : vector<10x16xf32>
    %38 = arith.divf %36, %37 : vector<10x16xf32>
    %39 = arith.mulf %32, %38 : vector<10x16xf32>
    %c0_21 = arith.constant 0 : index
    %c0_22 = arith.constant 0 : index
    %c0_23 = arith.constant 0 : index
    %40 = vector.load %arg10[%c0_21, %c0_22, %c0_23] : memref<2x10x16xf32, #tpu.memory_space<vmem>>, vector<1x10x16xf32>
    %41 = vector.shape_cast %40 : vector<1x10x16xf32> to vector<10x16xf32>
    %42 = vector.shape_cast %39 : vector<10x16xf32> to vector<1x10x16xf32>
    tpu.vector_store %arg10[%c0_21, %c0_22, %c0_23], %42 {strides = array<i32>} : memref<2x10x16xf32, #tpu.memory_space<vmem>>, vector<1x10x16xf32>,
    %c1 = arith.constant 1 : index
    %c0_24 = arith.constant 0 : index
    %c0_25 = arith.constant 0 : index
    %43 = vector.load %arg1[%c1, %c0_24, %c0_25] : memref<2x10x32xf32, #tpu.memory_space<vmem>>, vector<1x10x32xf32>
    %44 = vector.shape_cast %43 : vector<1x10x32xf32> to vector<10x32xf32>
    %cst_26 = arith.constant dense<0.000000e+00> : vector<10x32xf32>
    %45 = tpu.matmul %44, %0, %cst_26 {dimension_numbers = #tpu.dot_dimension_numbers<[1], [0], [0], [1], [0, 0, 1, 1], [], []>} : vector<10x32xf32>, vector<32x32xf32>, vector<10x32xf32> -> vector<10x32xf32>
    %46 = vector.broadcast %1 : vector<1x32xf32> to vector<10x32xf32>
    %47 = arith.addf %45, %46 : vector<10x32xf32>
    %c1_27 = arith.constant 1 : index
    %c0_28 = arith.constant 0 : index
    %c0_29 = arith.constant 0 : index
    %48 = vector.load %arg2[%c1_27, %c0_28, %c0_29] : memref<2x10x32xf32, #tpu.memory_space<vmem>>, vector<1x10x32xf32>
    %49 = vector.shape_cast %48 : vector<1x10x32xf32> to vector<10x32xf32>
    %cst_30 = arith.constant dense<0.000000e+00> : vector<10x32xf32>
    %50 = tpu.matmul %49, %2, %cst_30 {dimension_numbers = #tpu.dot_dimension_numbers<[1], [0], [0], [1], [0, 0, 1, 1], [], []>} : vector<10x32xf32>, vector<32x32xf32>, vector<10x32xf32> -> vector<10x32xf32>
    %51 = vector.broadcast %3 : vector<1x32xf32> to vector<10x32xf32>
    %52 = arith.addf %50, %51 : vector<10x32xf32>
    %53 = vector.extract_strided_slice %47 {offsets = [0, 0], sizes = [10, 16], strides = [1, 1]} : vector<10x32xf32> to vector<10x16xf32>
    %54 = math.tanh %53 : vector<10x16xf32>
    %55 = vector.extract_strided_slice %47 {offsets = [0, 16], sizes = [10, 16], strides = [1, 1]} : vector<10x32xf32> to vector<10x16xf32>
    %56 = arith.negf %55 : vector<10x16xf32>
    %57 = math.exp %56 : vector<10x16xf32>
    %cst_31 = arith.constant 1.000000e+00 : f32
    %58 = vector.broadcast %cst_31 : f32 to vector<10x16xf32>
    %59 = arith.addf %58, %57 : vector<10x16xf32>
    %60 = arith.divf %58, %59 : vector<10x16xf32>
    %61 = arith.mulf %54, %60 : vector<10x16xf32>
    %c1_32 = arith.constant 1 : index
    %c0_33 = arith.constant 0 : index
    %c0_34 = arith.constant 0 : index
    %62 = vector.load %arg9[%c1_32, %c0_33, %c0_34] : memref<2x10x16xf32, #tpu.memory_space<vmem>>, vector<1x10x16xf32>
    %63 = vector.shape_cast %62 : vector<1x10x16xf32> to vector<10x16xf32>
    %64 = vector.shape_cast %61 : vector<10x16xf32> to vector<1x10x16xf32>
    tpu.vector_store %arg9[%c1_32, %c0_33, %c0_34], %64 {strides = array<i32>} : memref<2x10x16xf32, #tpu.memory_space<vmem>>, vector<1x10x16xf32>,
    %65 = vector.extract_strided_slice %52 {offsets = [0, 0], sizes = [10, 16], strides = [1, 1]} : vector<10x32xf32> to vector<10x16xf32>
    %66 = math.tanh %65 : vector<10x16xf32>
    %67 = vector.extract_strided_slice %52 {offsets = [0, 16], sizes = [10, 16], strides = [1, 1]} : vector<10x32xf32> to vector<10x16xf32>
    %68 = arith.negf %67 : vector<10x16xf32>
    %69 = math.exp %68 : vector<10x16xf32>
    %cst_35 = arith.constant 1.000000e+00 : f32
    %70 = vector.broadcast %cst_35 : f32 to vector<10x16xf32>
    %71 = arith.addf %70, %69 : vector<10x16xf32>
    %72 = arith.divf %70, %71 : vector<10x16xf32>
    %73 = arith.mulf %66, %72 : vector<10x16xf32>
    %c1_36 = arith.constant 1 : index
    %c0_37 = arith.constant 0 : index
    %c0_38 = arith.constant 0 : index
    %74 = vector.load %arg10[%c1_36, %c0_37, %c0_38] : memref<2x10x16xf32, #tpu.memory_space<vmem>>, vector<1x10x16xf32>
    %75 = vector.shape_cast %74 : vector<1x10x16xf32> to vector<10x16xf32>
    %76 = vector.shape_cast %73 : vector<10x16xf32> to vector<1x10x16xf32>
    tpu.vector_store %arg10[%c1_36, %c0_37, %c0_38], %76 {strides = array<i32>} : memref<2x10x16xf32, #tpu.memory_space<vmem>>, vector<1x10x16xf32>,
    %c0_39 = arith.constant 0 : index
    %c0_40 = arith.constant 0 : index
    %c0_41 = arith.constant 0 : index
    %77 = vector.load %arg9[%c0_39, %c0_40, %c0_41] : memref<2x10x16xf32, #tpu.memory_space<vmem>>, vector<2x10x16xf32>
    %c0_42 = arith.constant 0 : index
    %c0_43 = arith.constant 0 : index
    %c0_44 = arith.constant 0 : index
    %78 = vector.load %arg10[%c0_42, %c0_43, %c0_44] : memref<2x10x16xf32, #tpu.memory_space<vmem>>, vector<2x10x16xf32>
    %79 = vector.shape_cast %4 : vector<1x16xf32> to vector<1x1x16xf32>
    %80 = vector.broadcast %79 : vector<1x1x16xf32> to vector<2x10x16xf32>
    %81 = arith.mulf %78, %80 : vector<2x10x16xf32>
    "tpu.trace_start"() <{level = 10 : i32, message = "brh,bsh->brs"}> : () -> ()
    %cst_45 = arith.constant dense<0.000000e+00> : vector<2x10x10xf32>
    %82 = tpu.matmul %81, %77, %cst_45 {dimension_numbers = #tpu.dot_dimension_numbers<[2], [2], [1], [1], [0, 0, 0, 1, 1, 1], [0], [0]>} : vector<2x10x16xf32>, vector<2x10x16xf32>, vector<2x10x10xf32> -> vector<2x10x10xf32>
    "tpu.trace_stop"() : () -> ()
    %83 = arith.mulf %78, %78 : vector<2x10x16xf32>
    %84 = arith.mulf %77, %77 : vector<2x10x16xf32>
    "tpu.trace_start"() <{level = 10 : i32, message = "brh,bsh->brs"}> : () -> ()
    %cst_46 = arith.constant dense<0.000000e+00> : vector<2x10x10xf32>
    %85 = tpu.matmul %83, %84, %cst_46 {dimension_numbers = #tpu.dot_dimension_numbers<[2], [2], [1], [1], [0, 0, 0, 1, 1, 1], [0], [0]>} : vector<2x10x16xf32>, vector<2x10x16xf32>, vector<2x10x10xf32> -> vector<2x10x10xf32>
    "tpu.trace_stop"() : () -> ()
    %cst_47 = arith.constant 1.000000e-24 : f32
    %86 = vector.broadcast %cst_47 : f32 to vector<2x10x10xf32>
    %87 = arith.maximumf %85, %86 : vector<2x10x10xf32>
    %88 = math.rsqrt %87 : vector<2x10x10xf32>
    %89 = arith.mulf %82, %88 : vector<2x10x10xf32>
    %cst_48 = arith.constant 0xFF800000 : f32
    %90 = vector.shape_cast %8 : vector<1x10x10xi1> to vector<1x10x10xi1>
    %91 = vector.broadcast %90 : vector<1x10x10xi1> to vector<2x10x10xi1>
    %92 = vector.broadcast %cst_48 : f32 to vector<2x10x10xf32>
    %93 = arith.select %91, %89, %92 : vector<2x10x10xi1>, vector<2x10x10xf32>
    %cst_49 = arith.constant dense<0xFF800000> : vector<2x10xf32>
    %94 = vector.multi_reduction <maximumf>, %93, %cst_49 [2] : vector<2x10x10xf32> to vector<2x10xf32>
    %95 = vector.shape_cast %94 : vector<2x10xf32> to vector<2x10x1xf32>
    %96 = vector.broadcast %95 : vector<2x10x1xf32> to vector<2x10x10xf32>
    %97 = arith.subf %89, %96 : vector<2x10x10xf32>
    %98 = math.exp %97 : vector<2x10x10xf32>
    %cst_50 = arith.constant 0.000000e+00 : f32
    %99 = vector.shape_cast %8 : vector<1x10x10xi1> to vector<1x10x10xi1>
    %100 = vector.broadcast %99 : vector<1x10x10xi1> to vector<2x10x10xi1>
    %101 = vector.broadcast %cst_50 : f32 to vector<2x10x10xf32>
    %102 = arith.select %100, %98, %101 : vector<2x10x10xi1>, vector<2x10x10xf32>
    %cst_51 = arith.constant dense<0.000000e+00> : vector<2x10xf32>
    %103 = vector.multi_reduction <add>, %102, %cst_51 [2] : vector<2x10x10xf32> to vector<2x10xf32>
    %104 = vector.shape_cast %103 : vector<2x10xf32> to vector<2x10x1xf32>
    %105 = tpu.reciprocal %104 : vector<2x10x1xf32> -> vector<2x10x1xf32>
    %106 = vector.broadcast %105 : vector<2x10x1xf32> to vector<2x10x10xf32>
    %107 = arith.mulf %102, %106 : vector<2x10x10xf32>
    %c0_52 = arith.constant 0 : index
    %c0_53 = arith.constant 0 : index
    %c0_54 = arith.constant 0 : index
    %108 = vector.load %arg1[%c0_52, %c0_53, %c0_54] : memref<2x10x32xf32, #tpu.memory_space<vmem>>, vector<2x10x32xf32>
    "tpu.trace_start"() <{level = 10 : i32, message = "brs,bsd->brd"}> : () -> ()
    %cst_55 = arith.constant dense<0.000000e+00> : vector<2x10x32xf32>
    %109 = tpu.matmul %107, %108, %cst_55 {dimension_numbers = #tpu.dot_dimension_numbers<[2], [1], [1], [2], [0, 0, 0, 1, 1, 2], [0], [0]>} : vector<2x10x10xf32>, vector<2x10x32xf32>, vector<2x10x32xf32> -> vector<2x10x32xf32>
    "tpu.trace_stop"() : () -> ()
    %c0_56 = arith.constant 0 : index
    %c0_57 = arith.constant 0 : index
    %c0_58 = arith.constant 0 : index
    %110 = vector.load %arg8[%c0_56, %c0_57, %c0_58] : memref<2x10x32xf32, #tpu.memory_space<vmem>>, vector<2x10x32xf32>
    tpu.vector_store %arg8[%c0_56, %c0_57, %c0_58], %109 {strides = array<i32>} : memref<2x10x32xf32, #tpu.memory_space<vmem>>, vector<2x10x32xf32>,
    return
  }
  func.func @transform_0(%arg0: i32) -> (i32, i32, i32) {
    %c0_i32 = arith.constant 0 : i32
    %c0_i32_0 = arith.constant 0 : i32
    %c0_i32_1 = arith.constant 0 : i32
    return %arg0, %c0_i32, %c0_i32_0 : i32, i32, i32
  }
  func.func @transform_1(%arg0: i32) -> (i32, i32, i32) {
    %c0_i32 = arith.constant 0 : i32
    %c0_i32_0 = arith.constant 0 : i32
    %c0_i32_1 = arith.constant 0 : i32
    return %arg0, %c0_i32, %c0_i32_0 : i32, i32, i32
  }
  func.func @transform_2(%arg0: i32) -> (i32, i32) {
    %c0_i32 = arith.constant 0 : i32
    %c0_i32_0 = arith.constant 0 : i32
    %c0_i32_1 = arith.constant 0 : i32
    return %c0_i32, %c0_i32_0 : i32, i32
  }
  func.func @transform_3(%arg0: i32) -> (i32, i32) {
    %c0_i32 = arith.constant 0 : i32
    %c0_i32_0 = arith.constant 0 : i32
    %c0_i32_1 = arith.constant 0 : i32
    return %c0_i32, %c0_i32_0 : i32, i32
  }
  func.func @transform_4(%arg0: i32) -> (i32, i32) {
    %c0_i32 = arith.constant 0 : i32
    %c0_i32_0 = arith.constant 0 : i32
    %c0_i32_1 = arith.constant 0 : i32
    return %c0_i32, %c0_i32_0 : i32, i32
  }
  func.func @transform_5(%arg0: i32) -> (i32, i32) {
    %c0_i32 = arith.constant 0 : i32
    %c0_i32_0 = arith.constant 0 : i32
    %c0_i32_1 = arith.constant 0 : i32
    return %c0_i32, %c0_i32_0 : i32, i32
  }
  func.func @transform_6(%arg0: i32) -> (i32, i32) {
    %c0_i32 = arith.constant 0 : i32
    %c0_i32_0 = arith.constant 0 : i32
    %c0_i32_1 = arith.constant 0 : i32
    return %c0_i32, %c0_i32_0 : i32, i32
  }
  func.func @transform_7(%arg0: i32) -> (i32, i32, i32) {
    %c0_i32 = arith.constant 0 : i32
    %c0_i32_0 = arith.constant 0 : i32
    %c0_i32_1 = arith.constant 0 : i32
    return %arg0, %c0_i32, %c0_i32_0 : i32, i32, i32
  }
}

</mosaic_0001>

<llo_original>
// kernel: h_att_forward.1
$region0: #{h_att_forward.1}
  #allocation0 [shape = 'u32[]', space=smem, size = 0x4, offset = 0x4, fixed_abs, tag = 'smem constant byte address 0x4 - core index']
  #allocation1 [shape = 'u32[144,128]{1,0:T(1,128)}', space=vmem, size = 0x12000, scoped, tag = 'internal scratch']
  #allocation2 [shape = 'f32[2,10,16]{2,1,0:T(8,128)}', space=vmem, size = 0x4000, scoped, tag = 'scratch operand']
  #allocation3 [shape = 'f32[2,10,16]{2,1,0:T(8,128)}', space=vmem, size = 0x4000, scoped, tag = 'scratch operand']
  %s0 = inlined_call_operand.vmem [shape: f32[2,10,32], index: 0, kind: input, shape index: {}]
  %s1 = inlined_call_operand.vmem [shape: f32[2,10,32], index: 1, kind: input, shape index: {}]
  %s2 = inlined_call_operand.vmem [shape: f32[32,32], index: 2, kind: input, shape index: {}]
  %s3 = inlined_call_operand.vmem [shape: f32[1,32], index: 3, kind: input, shape index: {}]
  %s4 = inlined_call_operand.vmem [shape: f32[32,32], index: 4, kind: input, shape index: {}]
  %s5 = inlined_call_operand.vmem [shape: f32[1,32], index: 5, kind: input, shape index: {}]
  %s6 = inlined_call_operand.vmem [shape: f32[1,16], index: 6, kind: input, shape index: {}]
  %s7 = inlined_call_operand.vmem [shape: f32[2,10,32], index: 7, kind: output, shape index: {}]
  %s8 = sld [smem:[#allocation0]]
  $region38: #{h_att_forward.1} parent=0
    _
  %s10 = ssub.s32 1, %s8
  %s11 = scalar_select 0, %s10, %s8
  // Predicated region
  $region2: #{h_att_forward.1} parent=0 // pred_check
    _
  $region3: #{h_att_forward.1} parent=0 // pred_check_branch
    %13 = sbr.rel (0) target = $region5
  $region4: #{h_att_forward.1} parent=0 // pred_region
    _
  $region5: #{h_att_forward.1} parent=0 // pred_fallthru
    _
  // Predicated region
  $region6: #{h_att_forward.1} parent=0 // pred_check
    _
  $region7: #{h_att_forward.1} parent=0 // pred_check_branch
    %15 = sbr.rel (0) target = $region9
  $region8: #{h_att_forward.1} parent=0 // pred_region
    _
  $region9: #{h_att_forward.1} parent=0 // pred_fallthru
    _
  // Predicated region
  $region10: #{h_att_forward.1} parent=0 // pred_check
    _
  $region11: #{h_att_forward.1} parent=0 // pred_check_branch
    %17 = sbr.rel (0) target = $region13
  $region12: #{h_att_forward.1} parent=0 // pred_region
    _
  $region13: #{h_att_forward.1} parent=0 // pred_fallthru
    _
  // Predicated region
  $region14: #{h_att_forward.1} parent=0 // pred_check
    _
  $region15: #{h_att_forward.1} parent=0 // pred_check_branch
    %19 = sbr.rel (0) target = $region17
  $region16: #{h_att_forward.1} parent=0 // pred_region
    _
  $region17: #{h_att_forward.1} parent=0 // pred_fallthru
    _
  // Predicated region
  $region18: #{h_att_forward.1} parent=0 // pred_check
    _
  $region19: #{h_att_forward.1} parent=0 // pred_check_branch
    %21 = sbr.rel (0) target = $region21
  $region20: #{h_att_forward.1} parent=0 // pred_region
    _
  $region21: #{h_att_forward.1} parent=0 // pred_fallthru
    _
  // Predicated region
  $region22: #{h_att_forward.1} parent=0 // pred_check
    _
  $region23: #{h_att_forward.1} parent=0 // pred_check_branch
    %23 = sbr.rel (0) target = $region25
  $region24: #{h_att_forward.1} parent=0 // pred_region
    _
  $region25: #{h_att_forward.1} parent=0 // pred_fallthru
    _
  // Predicated region
  $region26: #{h_att_forward.1} parent=0 // pred_check
    _
  $region27: #{h_att_forward.1} parent=0 // pred_check_branch
    %25 = sbr.rel (0) target = $region29
  $region28: #{h_att_forward.1} parent=0 // pred_region
    _
  $region29: #{h_att_forward.1} parent=0 // pred_fallthru
    _
  %v26 = vld [vmem:[%s2] sm:$0xff]
  %v27 = vld [vmem:[%s2 + $0x8] sm:$0xff]
  %v28 = vld [vmem:[%s2 + $0x10] sm:$0xff]
  %v29 = vld [vmem:[%s2 + $0x18] sm:$0xff]
  %v30 = vld [vmem:[%s3] sm:$0x1]
  %v31 = vld [vmem:[%s4] sm:$0xff]
  %v32 = vld [vmem:[%s4 + $0x8] sm:$0xff]
  %v33 = vld [vmem:[%s4 + $0x10] sm:$0xff]
  %v34 = vld [vmem:[%s4 + $0x18] sm:$0xff]
  %v35 = vld [vmem:[%s5] sm:$0x1]
  %v36 = vld [vmem:[%s6] sm:$0x1]
  %v37 = vlaneseq
  %v38 = vshrl.u32 %v37, 7
  %v39 = vadd.s32 %v38, 8
  %v40 = vlaneseq
  %v41 = vand.u32 %v40, 127
  %vm42 = vcmp.le.s32.totalorder %v41, %v38
  %vm43 = vcmp.le.s32.totalorder %v41, %v39
  %v44 = vld [vmem:[%s0] sm:$0xff]
  %v45 = vld [vmem:[%s0 + $0x8] sm:$0x3]
  %v47 = vlaneseq
  %v48 = vshrl.u32 %v47, 7
  %v49 = vsub.s32 0, %v48
  %v50 = vrot.slane %v30, %v49
  %vm52 = vcmask 261120
  %v54 = vsel %vm52, %v44, 0
  %v57 = vsel %vm52, %v45, 0
  %59 = vmatprep.subr.mxu0 0.0
  %60 = vmatpush1.msra.mxu0 %v26
  %61 = vmatprep.subr.mxu0 0.0
  %62 = vmatpush1.msra.mxu0 %v27
  %63 = vmatprep.subr.mxu0 0.0
  %64 = vmatpush1.msra.mxu0 %v28
  %65 = vmatprep.subr.mxu0 0.0
  %66 = vmatpush1.msra.mxu0 %v29
  %67 = vmatprep.subr.mxu0 0.0
  %68 = vmatpush1.msra.mxu0 0.0
  %69 = vmatprep.subr.mxu0 0.0
  %70 = vmatpush1.msra.mxu0 0.0
  %71 = vmatprep.subr.mxu0 0.0
  %72 = vmatpush1.msra.mxu0 0.0
  %73 = vmatprep.subr.mxu0 0.0
  %74 = vmatpush1.msra.mxu0 0.0
  %75 = vmatprep.subr.mxu0 0.0
  %76 = vmatpush1.msra.mxu0 0.0
  %77 = vmatprep.subr.mxu0 0.0
  %78 = vmatpush1.msra.mxu0 0.0
  %79 = vmatprep.subr.mxu0 0.0
  %80 = vmatpush1.msra.mxu0 0.0
  %81 = vmatprep.subr.mxu0 0.0
  %82 = vmatpush1.msra.mxu0 0.0
  %83 = vmatprep.subr.mxu0 0.0
  %84 = vmatpush1.msra.mxu0 0.0
  %85 = vmatprep.subr.mxu0 0.0
  %86 = vmatpush1.msra.mxu0 0.0
  %87 = vmatprep.subr.mxu0 0.0
  %88 = vmatpush1.msra.mxu0 0.0
  %89 = vmatprep.subr.mxu0 0.0
  %90 = vmatpush1.msra.mxu0 0.0
  %91 = vmatprep.subr.mxu0 0.0
  %92 = vmatpush1.msra.mxu0 0.0
  %93 = vmatprep.subr.mxu0 0.0
  %94 = vmatpush1.msra.mxu0 0.0
  %95 = vmatprep.subr.mxu0 0.0
  %96 = vmatpush1.msra.mxu0 0.0
  %97 = vmatprep.subr.mxu0 0.0
  %98 = vmatpush1.msra.mxu0 0.0
  %99 = vmatprep.subr.mxu0 0.0
  %100 = vmatpush1.msra.mxu0 0.0
  %101 = vmatprep.subr.mxu0 0.0
  %102 = vmatpush1.msra.mxu0 0.0
  %103 = vmatprep.subr.mxu0 0.0
  %104 = vmatpush1.msra.mxu0 0.0
  %105 = vmatprep.subr.mxu0 0.0
  %106 = vmatpush1.msra.mxu0 0.0
  %107 = vmatprep.subr.mxu0 0.0
  %108 = vmatpush1.msra.mxu0 0.0
  %109 = vmatprep.subr.mxu0 0.0
  %110 = vmatpush1.msra.mxu0 0.0
  %111 = vmatprep.subr.mxu0 0.0
  %112 = vmatpush1.msra.mxu0 0.0
  %113 = vmatprep.subr.mxu0 0.0
  %114 = vmatpush1.msra.mxu0 0.0
  %115 = vmatprep.subr.mxu0 0.0
  %116 = vmatpush1.msra.mxu0 0.0
  %117 = vmatprep.subr.mxu0 0.0
  %118 = vmatpush1.msra.mxu0 0.0
  %119 = vmatprep.subr.mxu0 0.0
  %120 = vmatpush1.msra.mxu0 0.0
  %121 = vmatprep.subr.mxu0 0.0
  %122 = vmatpush1.msra.mxu0 0.0
  %123 = vmatprep.mubr.f32.mxu0 0.0
  %124 = vmatmul.mubr.f32.gmra.mrb[0].mxu0 %v54
  %v125 = vpop.f32.mrb[0].mxu0
  %v126 = vadd.f32 %v50, %v125
  %v127 = vpop.f32.mrb[0].mxu0
  %128 = vmatprep.mubr.f32.mxu0 0.0
  %129 = vmatmul.mubr.f32.gmra.mrb[0].mxu0 %v57
  %v130 = vpop.f32.mrb[0].mxu0
  %v131 = vadd.f32 %v50, %v130
  %v132 = vpop.f32.mrb[0].mxu0
  %133 = vdwg.mxu0
  %v134 = vld [vmem:[%s1] sm:$0xff]
  %v135 = vld [vmem:[%s1 + $0x8] sm:$0x3]
  %v137 = vlaneseq
  %v138 = vshrl.u32 %v137, 7
  %v139 = vsub.s32 0, %v138
  %v140 = vrot.slane %v35, %v139
  %v143 = vsel %vm52, %v134, 0
  %v146 = vsel %vm52, %v135, 0
  %148 = vmatprep.subr.mxu0 0.0
  %149 = vmatpush1.msra.mxu0 %v31
  %150 = vmatprep.subr.mxu0 0.0
  %151 = vmatpush1.msra.mxu0 %v32
  %152 = vmatprep.subr.mxu0 0.0
  %153 = vmatpush1.msra.mxu0 %v33
  %154 = vmatprep.subr.mxu0 0.0
  %155 = vmatpush1.msra.mxu0 %v34
  %156 = vmatprep.subr.mxu0 0.0
  %157 = vmatpush1.msra.mxu0 0.0
  %158 = vmatprep.subr.mxu0 0.0
  %159 = vmatpush1.msra.mxu0 0.0
  %160 = vmatprep.subr.mxu0 0.0
  %161 = vmatpush1.msra.mxu0 0.0
  %162 = vmatprep.subr.mxu0 0.0
  %163 = vmatpush1.msra.mxu0 0.0
  %164 = vmatprep.subr.mxu0 0.0
  %165 = vmatpush1.msra.mxu0 0.0
  %166 = vmatprep.subr.mxu0 0.0
  %167 = vmatpush1.msra.mxu0 0.0
  %168 = vmatprep.subr.mxu0 0.0
  %169 = vmatpush1.msra.mxu0 0.0
  %170 = vmatprep.subr.mxu0 0.0
  %171 = vmatpush1.msra.mxu0 0.0
  %172 = vmatprep.subr.mxu0 0.0
  %173 = vmatpush1.msra.mxu0 0.0
  %174 = vmatprep.subr.mxu0 0.0
  %175 = vmatpush1.msra.mxu0 0.0
  %176 = vmatprep.subr.mxu0 0.0
  %177 = vmatpush1.msra.mxu0 0.0
  %178 = vmatprep.subr.mxu0 0.0
  %179 = vmatpush1.msra.mxu0 0.0
  %180 = vmatprep.subr.mxu0 0.0
  %181 = vmatpush1.msra.mxu0 0.0
  %182 = vmatprep.subr.mxu0 0.0
  %183 = vmatpush1.msra.mxu0 0.0
  %184 = vmatprep.subr.mxu0 0.0
  %185 = vmatpush1.msra.mxu0 0.0
  %186 = vmatprep.subr.mxu0 0.0
  %187 = vmatpush1.msra.mxu0 0.0
  %188 = vmatprep.subr.mxu0 0.0
  %189 = vmatpush1.msra.mxu0 0.0
  %190 = vmatprep.subr.mxu0 0.0
  %191 = vmatpush1.msra.mxu0 0.0
  %192 = vmatprep.subr.mxu0 0.0
  %193 = vmatpush1.msra.mxu0 0.0
  %194 = vmatprep.subr.mxu0 0.0
  %195 = vmatpush1.msra.mxu0 0.0
  %196 = vmatprep.subr.mxu0 0.0
  %197 = vmatpush1.msra.mxu0 0.0
  %198 = vmatprep.subr.mxu0 0.0
  %199 = vmatpush1.msra.mxu0 0.0
  %200 = vmatprep.subr.mxu0 0.0
  %201 = vmatpush1.msra.mxu0 0.0
  %202 = vmatprep.subr.mxu0 0.0
  %203 = vmatpush1.msra.mxu0 0.0
  %204 = vmatprep.subr.mxu0 0.0
  %205 = vmatpush1.msra.mxu0 0.0
  %206 = vmatprep.subr.mxu0 0.0
  %207 = vmatpush1.msra.mxu0 0.0
  %208 = vmatprep.subr.mxu0 0.0
  %209 = vmatpush1.msra.mxu0 0.0
  %210 = vmatprep.subr.mxu0 0.0
  %211 = vmatpush1.msra.mxu0 0.0
  %212 = vmatprep.mubr.f32.mxu0 0.0
  %213 = vmatmul.mubr.f32.gmra.mrb[0].mxu0 %v143
  %v214 = vpop.f32.mrb[0].mxu0
  %v215 = vadd.f32 %v140, %v214
  %v216 = vpop.f32.mrb[0].mxu0
  %217 = vmatprep.mubr.f32.mxu0 0.0
  %218 = vmatmul.mubr.f32.gmra.mrb[0].mxu0 %v146
  %v219 = vpop.f32.mrb[0].mxu0
  %v220 = vadd.f32 %v140, %v219
  %v221 = vpop.f32.mrb[0].mxu0
  %222 = vdwg.mxu0
  %v223 = vtanh.pop %v126
  %v224 = vtanh.pop %v131
  %v225 = vxor.u32 %v126, 2147483648
  %v226 = vxor.u32 %v131, 2147483648
  %v227 = vmul.f32 %v225, 1.442695
  %v228 = vpow.pop %v227
  %v229 = vmul.f32 %v226, 1.442695
  %v230 = vpow.pop %v229
  %v231 = vadd.f32 %v228, 1.0
  %v232 = vadd.f32 %v230, 1.0
  %v233 = vrcp.pop %v231
  %v234 = vmul.f32 1.0, %v233
  %v235 = vrcp.pop %v232
  %v236 = vmul.f32 1.0, %v235
  %239 = vrot.lane.b32.xlu0 %v234, 112
  %v240 = vpop.permute.xlu0 %239
  %241 = vrot.lane.b32.xlu0 %v236, 112
  %v242 = vpop.permute.xlu0 %241
  %v245 = vmul.f32 %v223, %v240
  %v246 = vmul.f32 %v224, %v242
  %vm247 = vcmask 130048
  %248 = vst.msk [vmem:[#allocation2] sm:$0xff] %vm247, %v245
  %vm249 = vcmask 123904
  %250 = vst.msk [vmem:[#allocation2 + $0x8] sm:$0x3] %vm249, %v246
  %v251 = vtanh.pop %v215
  %v252 = vtanh.pop %v220
  %v253 = vxor.u32 %v215, 2147483648
  %v254 = vxor.u32 %v220, 2147483648
  %v255 = vmul.f32 %v253, 1.442695
  %v256 = vpow.pop %v255
  %v257 = vmul.f32 %v254, 1.442695
  %v258 = vpow.pop %v257
  %v259 = vadd.f32 %v256, 1.0
  %v260 = vadd.f32 %v258, 1.0
  %v261 = vrcp.pop %v259
  %v262 = vmul.f32 1.0, %v261
  %v263 = vrcp.pop %v260
  %v264 = vmul.f32 1.0, %v263
  %267 = vrot.lane.b32.xlu0 %v262, 112
  %v268 = vpop.permute.xlu0 %267
  %269 = vrot.lane.b32.xlu0 %v264, 112
  %v270 = vpop.permute.xlu0 %269
  %v273 = vmul.f32 %v251, %v268
  %v274 = vmul.f32 %v252, %v270
  %275 = vst.msk [vmem:[#allocation3] sm:$0xff] %vm247, %v273
  %276 = vst.msk [vmem:[#allocation3 + $0x8] sm:$0x3] %vm249, %v274
  %s277 = scalar_lea.vmem %s0, 16
  %v278 = vld [vmem:[%s277] sm:$0xff]
  %v279 = vld [vmem:[%s277 + $0x8] sm:$0x3]
  %v281 = vsel %vm52, %v278, 0
  %v284 = vsel %vm52, %v279, 0
  %286 = vmatprep.subr.mxu0 0.0
  %287 = vmatpush1.msra.mxu0 %v26
  %288 = vmatprep.subr.mxu0 0.0
  %289 = vmatpush1.msra.mxu0 %v27
  %290 = vmatprep.subr.mxu0 0.0
  %291 = vmatpush1.msra.mxu0 %v28
  %292 = vmatprep.subr.mxu0 0.0
  %293 = vmatpush1.msra.mxu0 %v29
  %294 = vmatprep.subr.mxu0 0.0
  %295 = vmatpush1.msra.mxu0 0.0
  %296 = vmatprep.subr.mxu0 0.0
  %297 = vmatpush1.msra.mxu0 0.0
  %298 = vmatprep.subr.mxu0 0.0
  %299 = vmatpush1.msra.mxu0 0.0
  %300 = vmatprep.subr.mxu0 0.0
  %301 = vmatpush1.msra.mxu0 0.0
  %302 = vmatprep.subr.mxu0 0.0
  %303 = vmatpush1.msra.mxu0 0.0
  %304 = vmatprep.subr.mxu0 0.0
  %305 = vmatpush1.msra.mxu0 0.0
  %306 = vmatprep.subr.mxu0 0.0
  %307 = vmatpush1.msra.mxu0 0.0
  %308 = vmatprep.subr.mxu0 0.0
  %309 = vmatpush1.msra.mxu0 0.0
  %310 = vmatprep.subr.mxu0 0.0
  %311 = vmatpush1.msra.mxu0 0.0
  %312 = vmatprep.subr.mxu0 0.0
  %313 = vmatpush1.msra.mxu0 0.0
  %314 = vmatprep.subr.mxu0 0.0
  %315 = vmatpush1.msra.mxu0 0.0
  %316 = vmatprep.subr.mxu0 0.0
  %317 = vmatpush1.msra.mxu0 0.0
  %318 = vmatprep.subr.mxu0 0.0
  %319 = vmatpush1.msra.mxu0 0.0
  %320 = vmatprep.subr.mxu0 0.0
  %321 = vmatpush1.msra.mxu0 0.0
  %322 = vmatprep.subr.mxu0 0.0
  %323 = vmatpush1.msra.mxu0 0.0
  %324 = vmatprep.subr.mxu0 0.0
  %325 = vmatpush1.msra.mxu0 0.0
  %326 = vmatprep.subr.mxu0 0.0
  %327 = vmatpush1.msra.mxu0 0.0
  %328 = vmatprep.subr.mxu0 0.0
  %329 = vmatpush1.msra.mxu0 0.0
  %330 = vmatprep.subr.mxu0 0.0
  %331 = vmatpush1.msra.mxu0 0.0
  %332 = vmatprep.subr.mxu0 0.0
  %333 = vmatpush1.msra.mxu0 0.0
  %334 = vmatprep.subr.mxu0 0.0
  %335 = vmatpush1.msra.mxu0 0.0
  %336 = vmatprep.subr.mxu0 0.0
  %337 = vmatpush1.msra.mxu0 0.0
  %338 = vmatprep.subr.mxu0 0.0
  %339 = vmatpush1.msra.mxu0 0.0
  %340 = vmatprep.subr.mxu0 0.0
  %341 = vmatpush1.msra.mxu0 0.0
  %342 = vmatprep.subr.mxu0 0.0
  %343 = vmatpush1.msra.mxu0 0.0
  %344 = vmatprep.subr.mxu0 0.0
  %345 = vmatpush1.msra.mxu0 0.0
  %346 = vmatprep.subr.mxu0 0.0
  %347 = vmatpush1.msra.mxu0 0.0
  %348 = vmatprep.subr.mxu0 0.0
  %349 = vmatpush1.msra.mxu0 0.0
  %350 = vmatprep.mubr.f32.mxu0 0.0
  %351 = vmatmul.mubr.f32.gmra.mrb[0].mxu0 %v281
  %v352 = vpop.f32.mrb[0].mxu0
  %v353 = vadd.f32 %v50, %v352
  %v354 = vpop.f32.mrb[0].mxu0
  %355 = vmatprep.mubr.f32.mxu0 0.0
  %356 = vmatmul.mubr.f32.gmra.mrb[0].mxu0 %v284
  %v357 = vpop.f32.mrb[0].mxu0
  %v358 = vadd.f32 %v50, %v357
  %v359 = vpop.f32.mrb[0].mxu0
  %360 = vdwg.mxu0
  %s361 = scalar_lea.vmem %s1, 16
  %v362 = vld [vmem:[%s361] sm:$0xff]
  %v363 = vld [vmem:[%s361 + $0x8] sm:$0x3]
  %v365 = vsel %vm52, %v362, 0
  %v368 = vsel %vm52, %v363, 0
  %370 = vmatprep.subr.mxu0 0.0
  %371 = vmatpush1.msra.mxu0 %v31
  %372 = vmatprep.subr.mxu0 0.0
  %373 = vmatpush1.msra.mxu0 %v32
  %374 = vmatprep.subr.mxu0 0.0
  %375 = vmatpush1.msra.mxu0 %v33
  %376 = vmatprep.subr.mxu0 0.0
  %377 = vmatpush1.msra.mxu0 %v34
  %378 = vmatprep.subr.mxu0 0.0
  %379 = vmatpush1.msra.mxu0 0.0
  %380 = vmatprep.subr.mxu0 0.0
  %381 = vmatpush1.msra.mxu0 0.0
  %382 = vmatprep.subr.mxu0 0.0
  %383 = vmatpush1.msra.mxu0 0.0
  %384 = vmatprep.subr.mxu0 0.0
  %385 = vmatpush1.msra.mxu0 0.0
  %386 = vmatprep.subr.mxu0 0.0
  %387 = vmatpush1.msra.mxu0 0.0
  %388 = vmatprep.subr.mxu0 0.0
  %389 = vmatpush1.msra.mxu0 0.0
  %390 = vmatprep.subr.mxu0 0.0
  %391 = vmatpush1.msra.mxu0 0.0
  %392 = vmatprep.subr.mxu0 0.0
  %393 = vmatpush1.msra.mxu0 0.0
  %394 = vmatprep.subr.mxu0 0.0
  %395 = vmatpush1.msra.mxu0 0.0
  %396 = vmatprep.subr.mxu0 0.0
  %397 = vmatpush1.msra.mxu0 0.0
  %398 = vmatprep.subr.mxu0 0.0
  %399 = vmatpush1.msra.mxu0 0.0
  %400 = vmatprep.subr.mxu0 0.0
  %401 = vmatpush1.msra.mxu0 0.0
  %402 = vmatprep.subr.mxu0 0.0
  %403 = vmatpush1.msra.mxu0 0.0
  %404 = vmatprep.subr.mxu0 0.0
  %405 = vmatpush1.msra.mxu0 0.0
  %406 = vmatprep.subr.mxu0 0.0
  %407 = vmatpush1.msra.mxu0 0.0
  %408 = vmatprep.subr.mxu0 0.0
  %409 = vmatpush1.msra.mxu0 0.0
  %410 = vmatprep.subr.mxu0 0.0
  %411 = vmatpush1.msra.mxu0 0.0
  %412 = vmatprep.subr.mxu0 0.0
  %413 = vmatpush1.msra.mxu0 0.0
  %414 = vmatprep.subr.mxu0 0.0
  %415 = vmatpush1.msra.mxu0 0.0
  %416 = vmatprep.subr.mxu0 0.0
  %417 = vmatpush1.msra.mxu0 0.0
  %418 = vmatprep.subr.mxu0 0.0
  %419 = vmatpush1.msra.mxu0 0.0
  %420 = vmatprep.subr.mxu0 0.0
  %421 = vmatpush1.msra.mxu0 0.0
  %422 = vmatprep.subr.mxu0 0.0
  %423 = vmatpush1.msra.mxu0 0.0
  %424 = vmatprep.subr.mxu0 0.0
  %425 = vmatpush1.msra.mxu0 0.0
  %426 = vmatprep.subr.mxu0 0.0
  %427 = vmatpush1.msra.mxu0 0.0
  %428 = vmatprep.subr.mxu0 0.0
  %429 = vmatpush1.msra.mxu0 0.0
  %430 = vmatprep.subr.mxu0 0.0
  %431 = vmatpush1.msra.mxu0 0.0
  %432 = vmatprep.subr.mxu0 0.0
  %433 = vmatpush1.msra.mxu0 0.0
  %434 = vmatprep.mubr.f32.mxu0 0.0
  %435 = vmatmul.mubr.f32.gmra.mrb[0].mxu0 %v365
  %v436 = vpop.f32.mrb[0].mxu0
  %v437 = vadd.f32 %v140, %v436
  %v438 = vpop.f32.mrb[0].mxu0
  %439 = vmatprep.mubr.f32.mxu0 0.0
  %440 = vmatmul.mubr.f32.gmra.mrb[0].mxu0 %v368
  %v441 = vpop.f32.mrb[0].mxu0
  %v442 = vadd.f32 %v140, %v441
  %v443 = vpop.f32.mrb[0].mxu0
  %444 = vdwg.mxu0
  %v445 = vtanh.pop %v353
  %v446 = vtanh.pop %v358
  %v447 = vxor.u32 %v353, 2147483648
  %v448 = vxor.u32 %v358, 2147483648
  %v449 = vmul.f32 %v447, 1.442695
  %v450 = vpow.pop %v449
  %v451 = vmul.f32 %v448, 1.442695
  %v452 = vpow.pop %v451
  %v453 = vadd.f32 %v450, 1.0
  %v454 = vadd.f32 %v452, 1.0
  %v455 = vrcp.pop %v453
  %v456 = vmul.f32 1.0, %v455
  %v457 = vrcp.pop %v454
  %v458 = vmul.f32 1.0, %v457
  %461 = vrot.lane.b32.xlu0 %v456, 112
  %v462 = vpop.permute.xlu0 %461
  %463 = vrot.lane.b32.xlu0 %v458, 112
  %v464 = vpop.permute.xlu0 %463
  %v467 = vmul.f32 %v445, %v462
  %v468 = vmul.f32 %v446, %v464
  %s469 = scalar_lea.vmem [#allocation2], 16
  %470 = vst.msk [vmem:[%s469] sm:$0xff] %vm247, %v467
  %471 = vst.msk [vmem:[%s469 + $0x8] sm:$0x3] %vm249, %v468
  %v472 = vtanh.pop %v437
  %v473 = vtanh.pop %v442
  %v474 = vxor.u32 %v437, 2147483648
  %v475 = vxor.u32 %v442, 2147483648
  %v476 = vmul.f32 %v474, 1.442695
  %v477 = vpow.pop %v476
  %v478 = vmul.f32 %v475, 1.442695
  %v479 = vpow.pop %v478
  %v480 = vadd.f32 %v477, 1.0
  %v481 = vadd.f32 %v479, 1.0
  %v482 = vrcp.pop %v480
  %v483 = vmul.f32 1.0, %v482
  %v484 = vrcp.pop %v481
  %v485 = vmul.f32 1.0, %v484
  %488 = vrot.lane.b32.xlu0 %v483, 112
  %v489 = vpop.permute.xlu0 %488
  %490 = vrot.lane.b32.xlu0 %v485, 112
  %v491 = vpop.permute.xlu0 %490
  %v494 = vmul.f32 %v472, %v489
  %v495 = vmul.f32 %v473, %v491
  %s496 = scalar_lea.vmem [#allocation3], 16
  %497 = vst.msk [vmem:[%s496] sm:$0xff] %vm247, %v494
  %498 = vst.msk [vmem:[%s496 + $0x8] sm:$0x3] %vm249, %v495
  %v499 = vld [vmem:[#allocation2] sm:$0xff]
  %v500 = vld [vmem:[#allocation2 + $0x8] sm:$0x3]
  %v501 = vld [vmem:[#allocation2 + $0x10] sm:$0xff]
  %v502 = vld [vmem:[#allocation2 + $0x18] sm:$0x3]
  %v503 = vld [vmem:[#allocation3] sm:$0xff]
  %v504 = vld [vmem:[#allocation3 + $0x8] sm:$0x3]
  %v505 = vld [vmem:[#allocation3 + $0x10] sm:$0xff]
  %v506 = vld [vmem:[#allocation3 + $0x18] sm:$0x3]
  %v508 = vlaneseq
  %v509 = vshrl.u32 %v508, 7
  %v510 = vsub.s32 0, %v509
  %v511 = vrot.slane %v36, %v510
  %v513 = vmul.f32 %v503, %v511
  %v514 = vmul.f32 %v504, %v511
  %v515 = vmul.f32 %v505, %v511
  %v516 = vmul.f32 %v506, %v511
  %v518 = vsel %vm247, %v513, 0
  %v521 = vsel %vm247, %v514, 0
  %v524 = vsel %vm247, %v499, 0
  %v527 = vsel %vm247, %v500, 0
  %529 = vmatprep.subr.mxu0 0.0
  %530 = vmatpush1.xpose.msra.mxu0 %v524
  %531 = vmatprep.subr.mxu0 0.0
  %532 = vmatpush1.xpose.msra.mxu0 %v527
  %533 = vmatprep.subr.mxu0 0.0
  %534 = vmatpush1.xpose.msra.mxu0 0.0
  %535 = vmatprep.subr.mxu0 0.0
  %536 = vmatpush1.xpose.msra.mxu0 0.0
  %537 = vmatprep.subr.mxu0 0.0
  %538 = vmatpush1.xpose.msra.mxu0 0.0
  %539 = vmatprep.subr.mxu0 0.0
  %540 = vmatpush1.xpose.msra.mxu0 0.0
  %541 = vmatprep.subr.mxu0 0.0
  %542 = vmatpush1.xpose.msra.mxu0 0.0
  %543 = vmatprep.subr.mxu0 0.0
  %544 = vmatpush1.xpose.msra.mxu0 0.0
  %545 = vmatprep.subr.mxu0 0.0
  %546 = vmatpush1.xpose.msra.mxu0 0.0
  %547 = vmatprep.subr.mxu0 0.0
  %548 = vmatpush1.xpose.msra.mxu0 0.0
  %549 = vmatprep.subr.mxu0 0.0
  %550 = vmatpush1.xpose.msra.mxu0 0.0
  %551 = vmatprep.subr.mxu0 0.0
  %552 = vmatpush1.xpose.msra.mxu0 0.0
  %553 = vmatprep.subr.mxu0 0.0
  %554 = vmatpush1.xpose.msra.mxu0 0.0
  %555 = vmatprep.subr.mxu0 0.0
  %556 = vmatpush1.xpose.msra.mxu0 0.0
  %557 = vmatprep.subr.mxu0 0.0
  %558 = vmatpush1.xpose.msra.mxu0 0.0
  %559 = vmatprep.subr.mxu0 0.0
  %560 = vmatpush1.xpose.msra.mxu0 0.0
  %561 = vmatprep.subr.mxu0 0.0
  %562 = vmatpush1.xpose.msra.mxu0 0.0
  %563 = vmatprep.subr.mxu0 0.0
  %564 = vmatpush1.xpose.msra.mxu0 0.0
  %565 = vmatprep.subr.mxu0 0.0
  %566 = vmatpush1.xpose.msra.mxu0 0.0
  %567 = vmatprep.subr.mxu0 0.0
  %568 = vmatpush1.xpose.msra.mxu0 0.0
  %569 = vmatprep.subr.mxu0 0.0
  %570 = vmatpush1.xpose.msra.mxu0 0.0
  %571 = vmatprep.subr.mxu0 0.0
  %572 = vmatpush1.xpose.msra.mxu0 0.0
  %573 = vmatprep.subr.mxu0 0.0
  %574 = vmatpush1.xpose.msra.mxu0 0.0
  %575 = vmatprep.subr.mxu0 0.0
  %576 = vmatpush1.xpose.msra.mxu0 0.0
  %577 = vmatprep.subr.mxu0 0.0
  %578 = vmatpush1.xpose.msra.mxu0 0.0
  %579 = vmatprep.subr.mxu0 0.0
  %580 = vmatpush1.xpose.msra.mxu0 0.0
  %581 = vmatprep.subr.mxu0 0.0
  %582 = vmatpush1.xpose.msra.mxu0 0.0
  %583 = vmatprep.subr.mxu0 0.0
  %584 = vmatpush1.xpose.msra.mxu0 0.0
  %585 = vmatprep.subr.mxu0 0.0
  %586 = vmatpush1.xpose.msra.mxu0 0.0
  %587 = vmatprep.subr.mxu0 0.0
  %588 = vmatpush1.xpose.msra.mxu0 0.0
  %589 = vmatprep.subr.mxu0 0.0
  %590 = vmatpush1.xpose.msra.mxu0 0.0
  %591 = vmatprep.subr.mxu0 0.0
  %592 = vmatpush1.xpose.msra.mxu0 0.0
  %593 = vmatprep.mubr.f32.mxu0 0.0
  %594 = vmatmul.mubr.f32.gmra.mrb[0].mxu0 %v518
  %v595 = vpop.f32.mrb[0].mxu0
  %v596 = vadd.f32 0.0, %v595
  %v597 = vpop.f32.mrb[0].mxu0
  %598 = vmatprep.mubr.f32.mxu0 0.0
  %599 = vmatmul.mubr.f32.gmra.mrb[0].mxu0 %v521
  %v600 = vpop.f32.mrb[0].mxu0
  %v601 = vadd.f32 0.0, %v600
  %v602 = vpop.f32.mrb[0].mxu0
  %603 = vdwg.mxu0
  %v605 = vsel %vm247, %v515, 0
  %v608 = vsel %vm247, %v516, 0
  %v611 = vsel %vm247, %v501, 0
  %v614 = vsel %vm247, %v502, 0
  %616 = vmatprep.subr.mxu0 0.0
  %617 = vmatpush1.xpose.msra.mxu0 %v611
  %618 = vmatprep.subr.mxu0 0.0
  %619 = vmatpush1.xpose.msra.mxu0 %v614
  %620 = vmatprep.subr.mxu0 0.0
  %621 = vmatpush1.xpose.msra.mxu0 0.0
  %622 = vmatprep.subr.mxu0 0.0
  %623 = vmatpush1.xpose.msra.mxu0 0.0
  %624 = vmatprep.subr.mxu0 0.0
  %625 = vmatpush1.xpose.msra.mxu0 0.0
  %626 = vmatprep.subr.mxu0 0.0
  %627 = vmatpush1.xpose.msra.mxu0 0.0
  %628 = vmatprep.subr.mxu0 0.0
  %629 = vmatpush1.xpose.msra.mxu0 0.0
  %630 = vmatprep.subr.mxu0 0.0
  %631 = vmatpush1.xpose.msra.mxu0 0.0
  %632 = vmatprep.subr.mxu0 0.0
  %633 = vmatpush1.xpose.msra.mxu0 0.0
  %634 = vmatprep.subr.mxu0 0.0
  %635 = vmatpush1.xpose.msra.mxu0 0.0
  %636 = vmatprep.subr.mxu0 0.0
  %637 = vmatpush1.xpose.msra.mxu0 0.0
  %638 = vmatprep.subr.mxu0 0.0
  %639 = vmatpush1.xpose.msra.mxu0 0.0
  %640 = vmatprep.subr.mxu0 0.0
  %641 = vmatpush1.xpose.msra.mxu0 0.0
  %642 = vmatprep.subr.mxu0 0.0
  %643 = vmatpush1.xpose.msra.mxu0 0.0
  %644 = vmatprep.subr.mxu0 0.0
  %645 = vmatpush1.xpose.msra.mxu0 0.0
  %646 = vmatprep.subr.mxu0 0.0
  %647 = vmatpush1.xpose.msra.mxu0 0.0
  %648 = vmatprep.subr.mxu0 0.0
  %649 = vmatpush1.xpose.msra.mxu0 0.0
  %650 = vmatprep.subr.mxu0 0.0
  %651 = vmatpush1.xpose.msra.mxu0 0.0
  %652 = vmatprep.subr.mxu0 0.0
  %653 = vmatpush1.xpose.msra.mxu0 0.0
  %654 = vmatprep.subr.mxu0 0.0
  %655 = vmatpush1.xpose.msra.mxu0 0.0
  %656 = vmatprep.subr.mxu0 0.0
  %657 = vmatpush1.xpose.msra.mxu0 0.0
  %658 = vmatprep.subr.mxu0 0.0
  %659 = vmatpush1.xpose.msra.mxu0 0.0
  %660 = vmatprep.subr.mxu0 0.0
  %661 = vmatpush1.xpose.msra.mxu0 0.0
  %662 = vmatprep.subr.mxu0 0.0
  %663 = vmatpush1.xpose.msra.mxu0 0.0
  %664 = vmatprep.subr.mxu0 0.0
  %665 = vmatpush1.xpose.msra.mxu0 0.0
  %666 = vmatprep.subr.mxu0 0.0
  %667 = vmatpush1.xpose.msra.mxu0 0.0
  %668 = vmatprep.subr.mxu0 0.0
  %669 = vmatpush1.xpose.msra.mxu0 0.0
  %670 = vmatprep.subr.mxu0 0.0
  %671 = vmatpush1.xpose.msra.mxu0 0.0
  %672 = vmatprep.subr.mxu0 0.0
  %673 = vmatpush1.xpose.msra.mxu0 0.0
  %674 = vmatprep.subr.mxu0 0.0
  %675 = vmatpush1.xpose.msra.mxu0 0.0
  %676 = vmatprep.subr.mxu0 0.0
  %677 = vmatpush1.xpose.msra.mxu0 0.0
  %678 = vmatprep.subr.mxu0 0.0
  %679 = vmatpush1.xpose.msra.mxu0 0.0
  %680 = vmatprep.mubr.f32.mxu0 0.0
  %681 = vmatmul.mubr.f32.gmra.mrb[0].mxu0 %v605
  %v682 = vpop.f32.mrb[0].mxu0
  %v683 = vadd.f32 0.0, %v682
  %v684 = vpop.f32.mrb[0].mxu0
  %685 = vmatprep.mubr.f32.mxu0 0.0
  %686 = vmatmul.mubr.f32.gmra.mrb[0].mxu0 %v608
  %v687 = vpop.f32.mrb[0].mxu0
  %v688 = vadd.f32 0.0, %v687
  %v689 = vpop.f32.mrb[0].mxu0
  %690 = vdwg.mxu0
  %v691 = vmul.f32 %v503, %v503
  %v692 = vmul.f32 %v504, %v504
  %v693 = vmul.f32 %v505, %v505
  %v694 = vmul.f32 %v506, %v506
  %v695 = vmul.f32 %v499, %v499
  %v696 = vmul.f32 %v500, %v500
  %v697 = vmul.f32 %v501, %v501
  %v698 = vmul.f32 %v502, %v502
  %v700 = vsel %vm247, %v691, 0
  %v703 = vsel %vm247, %v692, 0
  %v706 = vsel %vm247, %v695, 0
  %v709 = vsel %vm247, %v696, 0
  %711 = vmatprep.subr.mxu0 0.0
  %712 = vmatpush1.xpose.msra.mxu0 %v706
  %713 = vmatprep.subr.mxu0 0.0
  %714 = vmatpush1.xpose.msra.mxu0 %v709
  %715 = vmatprep.subr.mxu0 0.0
  %716 = vmatpush1.xpose.msra.mxu0 0.0
  %717 = vmatprep.subr.mxu0 0.0
  %718 = vmatpush1.xpose.msra.mxu0 0.0
  %719 = vmatprep.subr.mxu0 0.0
  %720 = vmatpush1.xpose.msra.mxu0 0.0
  %721 = vmatprep.subr.mxu0 0.0
  %722 = vmatpush1.xpose.msra.mxu0 0.0
  %723 = vmatprep.subr.mxu0 0.0
  %724 = vmatpush1.xpose.msra.mxu0 0.0
  %725 = vmatprep.subr.mxu0 0.0
  %726 = vmatpush1.xpose.msra.mxu0 0.0
  %727 = vmatprep.subr.mxu0 0.0
  %728 = vmatpush1.xpose.msra.mxu0 0.0
  %729 = vmatprep.subr.mxu0 0.0
  %730 = vmatpush1.xpose.msra.mxu0 0.0
  %731 = vmatprep.subr.mxu0 0.0
  %732 = vmatpush1.xpose.msra.mxu0 0.0
  %733 = vmatprep.subr.mxu0 0.0
  %734 = vmatpush1.xpose.msra.mxu0 0.0
  %735 = vmatprep.subr.mxu0 0.0
  %736 = vmatpush1.xpose.msra.mxu0 0.0
  %737 = vmatprep.subr.mxu0 0.0
  %738 = vmatpush1.xpose.msra.mxu0 0.0
  %739 = vmatprep.subr.mxu0 0.0
  %740 = vmatpush1.xpose.msra.mxu0 0.0
  %741 = vmatprep.subr.mxu0 0.0
  %742 = vmatpush1.xpose.msra.mxu0 0.0
  %743 = vmatprep.subr.mxu0 0.0
  %744 = vmatpush1.xpose.msra.mxu0 0.0
  %745 = vmatprep.subr.mxu0 0.0
  %746 = vmatpush1.xpose.msra.mxu0 0.0
  %747 = vmatprep.subr.mxu0 0.0
  %748 = vmatpush1.xpose.msra.mxu0 0.0
  %749 = vmatprep.subr.mxu0 0.0
  %750 = vmatpush1.xpose.msra.mxu0 0.0
  %751 = vmatprep.subr.mxu0 0.0
  %752 = vmatpush1.xpose.msra.mxu0 0.0
  %753 = vmatprep.subr.mxu0 0.0
  %754 = vmatpush1.xpose.msra.mxu0 0.0
  %755 = vmatprep.subr.mxu0 0.0
  %756 = vmatpush1.xpose.msra.mxu0 0.0
  %757 = vmatprep.subr.mxu0 0.0
  %758 = vmatpush1.xpose.msra.mxu0 0.0
  %759 = vmatprep.subr.mxu0 0.0
  %760 = vmatpush1.xpose.msra.mxu0 0.0
  %761 = vmatprep.subr.mxu0 0.0
  %762 = vmatpush1.xpose.msra.mxu0 0.0
  %763 = vmatprep.subr.mxu0 0.0
  %764 = vmatpush1.xpose.msra.mxu0 0.0
  %765 = vmatprep.subr.mxu0 0.0
  %766 = vmatpush1.xpose.msra.mxu0 0.0
  %767 = vmatprep.subr.mxu0 0.0
  %768 = vmatpush1.xpose.msra.mxu0 0.0
  %769 = vmatprep.subr.mxu0 0.0
  %770 = vmatpush1.xpose.msra.mxu0 0.0
  %771 = vmatprep.subr.mxu0 0.0
  %772 = vmatpush1.xpose.msra.mxu0 0.0
  %773 = vmatprep.subr.mxu0 0.0
  %774 = vmatpush1.xpose.msra.mxu0 0.0
  %775 = vmatprep.mubr.f32.mxu0 0.0
  %776 = vmatmul.mubr.f32.gmra.mrb[0].mxu0 %v700
  %v777 = vpop.f32.mrb[0].mxu0
  %v778 = vadd.f32 0.0, %v777
  %v779 = vpop.f32.mrb[0].mxu0
  %780 = vmatprep.mubr.f32.mxu0 0.0
  %781 = vmatmul.mubr.f32.gmra.mrb[0].mxu0 %v703
  %v782 = vpop.f32.mrb[0].mxu0
  %v783 = vadd.f32 0.0, %v782
  %v784 = vpop.f32.mrb[0].mxu0
  %785 = vdwg.mxu0
  %v787 = vsel %vm247, %v693, 0
  %v790 = vsel %vm247, %v694, 0
  %v793 = vsel %vm247, %v697, 0
  %v796 = vsel %vm247, %v698, 0
  %798 = vmatprep.subr.mxu0 0.0
  %799 = vmatpush1.xpose.msra.mxu0 %v793
  %800 = vmatprep.subr.mxu0 0.0
  %801 = vmatpush1.xpose.msra.mxu0 %v796
  %802 = vmatprep.subr.mxu0 0.0
  %803 = vmatpush1.xpose.msra.mxu0 0.0
  %804 = vmatprep.subr.mxu0 0.0
  %805 = vmatpush1.xpose.msra.mxu0 0.0
  %806 = vmatprep.subr.mxu0 0.0
  %807 = vmatpush1.xpose.msra.mxu0 0.0
  %808 = vmatprep.subr.mxu0 0.0
  %809 = vmatpush1.xpose.msra.mxu0 0.0
  %810 = vmatprep.subr.mxu0 0.0
  %811 = vmatpush1.xpose.msra.mxu0 0.0
  %812 = vmatprep.subr.mxu0 0.0
  %813 = vmatpush1.xpose.msra.mxu0 0.0
  %814 = vmatprep.subr.mxu0 0.0
  %815 = vmatpush1.xpose.msra.mxu0 0.0
  %816 = vmatprep.subr.mxu0 0.0
  %817 = vmatpush1.xpose.msra.mxu0 0.0
  %818 = vmatprep.subr.mxu0 0.0
  %819 = vmatpush1.xpose.msra.mxu0 0.0
  %820 = vmatprep.subr.mxu0 0.0
  %821 = vmatpush1.xpose.msra.mxu0 0.0
  %822 = vmatprep.subr.mxu0 0.0
  %823 = vmatpush1.xpose.msra.mxu0 0.0
  %824 = vmatprep.subr.mxu0 0.0
  %825 = vmatpush1.xpose.msra.mxu0 0.0
  %826 = vmatprep.subr.mxu0 0.0
  %827 = vmatpush1.xpose.msra.mxu0 0.0
  %828 = vmatprep.subr.mxu0 0.0
  %829 = vmatpush1.xpose.msra.mxu0 0.0
  %830 = vmatprep.subr.mxu0 0.0
  %831 = vmatpush1.xpose.msra.mxu0 0.0
  %832 = vmatprep.subr.mxu0 0.0
  %833 = vmatpush1.xpose.msra.mxu0 0.0
  %834 = vmatprep.subr.mxu0 0.0
  %835 = vmatpush1.xpose.msra.mxu0 0.0
  %836 = vmatprep.subr.mxu0 0.0
  %837 = vmatpush1.xpose.msra.mxu0 0.0
  %838 = vmatprep.subr.mxu0 0.0
  %839 = vmatpush1.xpose.msra.mxu0 0.0
  %840 = vmatprep.subr.mxu0 0.0
  %841 = vmatpush1.xpose.msra.mxu0 0.0
  %842 = vmatprep.subr.mxu0 0.0
  %843 = vmatpush1.xpose.msra.mxu0 0.0
  %844 = vmatprep.subr.mxu0 0.0
  %845 = vmatpush1.xpose.msra.mxu0 0.0
  %846 = vmatprep.subr.mxu0 0.0
  %847 = vmatpush1.xpose.msra.mxu0 0.0
  %848 = vmatprep.subr.mxu0 0.0
  %849 = vmatpush1.xpose.msra.mxu0 0.0
  %850 = vmatprep.subr.mxu0 0.0
  %851 = vmatpush1.xpose.msra.mxu0 0.0
  %852 = vmatprep.subr.mxu0 0.0
  %853 = vmatpush1.xpose.msra.mxu0 0.0
  %854 = vmatprep.subr.mxu0 0.0
  %855 = vmatpush1.xpose.msra.mxu0 0.0
  %856 = vmatprep.subr.mxu0 0.0
  %857 = vmatpush1.xpose.msra.mxu0 0.0
  %858 = vmatprep.subr.mxu0 0.0
  %859 = vmatpush1.xpose.msra.mxu0 0.0
  %860 = vmatprep.subr.mxu0 0.0
  %861 = vmatpush1.xpose.msra.mxu0 0.0
  %862 = vmatprep.mubr.f32.mxu0 0.0
  %863 = vmatmul.mubr.f32.gmra.mrb[0].mxu0 %v787
  %v864 = vpop.f32.mrb[0].mxu0
  %v865 = vadd.f32 0.0, %v864
  %v866 = vpop.f32.mrb[0].mxu0
  %867 = vmatprep.mubr.f32.mxu0 0.0
  %868 = vmatmul.mubr.f32.gmra.mrb[0].mxu0 %v790
  %v869 = vpop.f32.mrb[0].mxu0
  %v870 = vadd.f32 0.0, %v869
  %v871 = vpop.f32.mrb[0].mxu0
  %872 = vdwg.mxu0
  %v873 = vmax.f32 %v778, 1e-24
  %v874 = vmax.f32 %v783, 1e-24
  %v875 = vmax.f32 %v865, 1e-24
  %v876 = vmax.f32 %v870, 1e-24
  %v877 = vrsqrt.pop %v873
  %v878 = vrsqrt.pop %v874
  %v879 = vrsqrt.pop %v875
  %v880 = vrsqrt.pop %v876
  %v881 = vmul.f32 %v596, %v877
  %v882 = vmul.f32 %v601, %v878
  %v883 = vmul.f32 %v683, %v879
  %v884 = vmul.f32 %v688, %v880
  %v885 = vsel %vm42, 1, 0
  %v886 = vsel %vm43, 1, 0
  %vm887 = vcmp.eq.s32.totalorder %v885, 1
  %vm888 = vcmp.eq.s32.totalorder %v886, 1
  %v889 = vsel %vm887, %v881, -inf
  %v890 = vsel %vm888, %v882, -inf
  %v891 = vsel %vm887, %v883, -inf
  %v892 = vsel %vm888, %v884, -inf
  %vm893 = vcmask 80896
  %v894 = vsel %vm893, %v889, -inf
  %895 = vmax.xlane.f32.xlu0 %v894
  %v896 = vpop.xlane.xlu0 %895
  %vm897 = vcmask 74752
  %v898 = vsel %vm897, %v890, -inf
  %899 = vmax.xlane.f32.xlu0 %v898
  %v900 = vpop.xlane.xlu0 %899
  %v901 = vsel %vm893, %v891, -inf
  %902 = vmax.xlane.f32.xlu0 %v901
  %v903 = vpop.xlane.xlu0 %902
  %v904 = vsel %vm897, %v892, -inf
  %905 = vmax.xlane.f32.xlu0 %v904
  %v906 = vpop.xlane.xlu0 %905
  %v907 = vsub.f32 %v881, %v896
  %v908 = vsub.f32 %v882, %v900
  %v909 = vsub.f32 %v883, %v903
  %v910 = vsub.f32 %v884, %v906
  %v911 = vmul.f32 %v907, 1.442695
  %v912 = vpow.pop %v911
  %v913 = vmul.f32 %v908, 1.442695
  %v914 = vpow.pop %v913
  %v915 = vmul.f32 %v909, 1.442695
  %v916 = vpow.pop %v915
  %v917 = vmul.f32 %v910, 1.442695
  %v918 = vpow.pop %v917
  %v919 = vsel %vm887, %v912, 0.0
  %v920 = vsel %vm888, %v914, 0.0
  %v921 = vsel %vm887, %v916, 0.0
  %v922 = vsel %vm888, %v918, 0.0
  %v923 = vsel %vm893, %v919, 0.0
  %924 = vadd.xlane.f32.xlu0 %v923
  %v925 = vpop.xlane.xlu0 %924
  %v926 = vsel %vm897, %v920, 0.0
  %927 = vadd.xlane.f32.xlu0 %v926
  %v928 = vpop.xlane.xlu0 %927
  %v929 = vsel %vm893, %v921, 0.0
  %930 = vadd.xlane.f32.xlu0 %v929
  %v931 = vpop.xlane.xlu0 %930
  %v932 = vsel %vm897, %v922, 0.0
  %933 = vadd.xlane.f32.xlu0 %v932
  %v934 = vpop.xlane.xlu0 %933
  %v935 = vrcp.pop %v925
  %v936 = vrcp.pop %v928
  %v937 = vrcp.pop %v931
  %v938 = vrcp.pop %v934
  %v939 = vmul.f32 %v919, %v935
  %v940 = vmul.f32 %v920, %v936
  %v941 = vmul.f32 %v921, %v937
  %v942 = vmul.f32 %v922, %v938
  %v943 = vld [vmem:[%s0] sm:$0xff]
  %v944 = vld [vmem:[%s0 + $0x8] sm:$0x3]
  %v945 = vld [vmem:[%s0 + $0x10] sm:$0xff]
  %v946 = vld [vmem:[%s0 + $0x18] sm:$0x3]
  %v948 = vsel %vm893, %v939, 0
  %v951 = vsel %vm893, %v940, 0
  %vm953 = vcmask 1041408
  %v955 = vsel %vm953, %v944, 0
  %957 = vmatprep.subr.mxu0 0.0
  %958 = vmatpush1.msra.mxu0 %v943
  %959 = vmatprep.subr.mxu0 0.0
  %960 = vmatpush1.msra.mxu0 %v955
  %961 = vmatprep.subr.mxu0 0.0
  %962 = vmatpush1.msra.mxu0 0.0
  %963 = vmatprep.subr.mxu0 0.0
  %964 = vmatpush1.msra.mxu0 0.0
  %965 = vmatprep.subr.mxu0 0.0
  %966 = vmatpush1.msra.mxu0 0.0
  %967 = vmatprep.subr.mxu0 0.0
  %968 = vmatpush1.msra.mxu0 0.0
  %969 = vmatprep.subr.mxu0 0.0
  %970 = vmatpush1.msra.mxu0 0.0
  %971 = vmatprep.subr.mxu0 0.0
  %972 = vmatpush1.msra.mxu0 0.0
  %973 = vmatprep.subr.mxu0 0.0
  %974 = vmatpush1.msra.mxu0 0.0
  %975 = vmatprep.subr.mxu0 0.0
  %976 = vmatpush1.msra.mxu0 0.0
  %977 = vmatprep.subr.mxu0 0.0
  %978 = vmatpush1.msra.mxu0 0.0
  %979 = vmatprep.subr.mxu0 0.0
  %980 = vmatpush1.msra.mxu0 0.0
  %981 = vmatprep.subr.mxu0 0.0
  %982 = vmatpush1.msra.mxu0 0.0
  %983 = vmatprep.subr.mxu0 0.0
  %984 = vmatpush1.msra.mxu0 0.0
  %985 = vmatprep.subr.mxu0 0.0
  %986 = vmatpush1.msra.mxu0 0.0
  %987 = vmatprep.subr.mxu0 0.0
  %988 = vmatpush1.msra.mxu0 0.0
  %989 = vmatprep.subr.mxu0 0.0
  %990 = vmatpush1.msra.mxu0 0.0
  %991 = vmatprep.subr.mxu0 0.0
  %992 = vmatpush1.msra.mxu0 0.0
  %993 = vmatprep.subr.mxu0 0.0
  %994 = vmatpush1.msra.mxu0 0.0
  %995 = vmatprep.subr.mxu0 0.0
  %996 = vmatpush1.msra.mxu0 0.0
  %997 = vmatprep.subr.mxu0 0.0
  %998 = vmatpush1.msra.mxu0 0.0
  %999 = vmatprep.subr.mxu0 0.0
  %1000 = vmatpush1.msra.mxu0 0.0
  %1001 = vmatprep.subr.mxu0 0.0
  %1002 = vmatpush1.msra.mxu0 0.0
  %1003 = vmatprep.subr.mxu0 0.0
  %1004 = vmatpush1.msra.mxu0 0.0
  %1005 = vmatprep.subr.mxu0 0.0
  %1006 = vmatpush1.msra.mxu0 0.0
  %1007 = vmatprep.subr.mxu0 0.0
  %1008 = vmatpush1.msra.mxu0 0.0
  %1009 = vmatprep.subr.mxu0 0.0
  %1010 = vmatpush1.msra.mxu0 0.0
  %1011 = vmatprep.subr.mxu0 0.0
  %1012 = vmatpush1.msra.mxu0 0.0
  %1013 = vmatprep.subr.mxu0 0.0
  %1014 = vmatpush1.msra.mxu0 0.0
  %1015 = vmatprep.subr.mxu0 0.0
  %1016 = vmatpush1.msra.mxu0 0.0
  %1017 = vmatprep.subr.mxu0 0.0
  %1018 = vmatpush1.msra.mxu0 0.0
  %1019 = vmatprep.subr.mxu0 0.0
  %1020 = vmatpush1.msra.mxu0 0.0
  %1021 = vmatprep.mubr.f32.mxu0 0.0
  %1022 = vmatmul.mubr.f32.gmra.mrb[0].mxu0 %v948
  %v1023 = vpop.f32.mrb[0].mxu0
  %v1024 = vadd.f32 0.0, %v1023
  %v1025 = vpop.f32.mrb[0].mxu0
  %1026 = vmatprep.mubr.f32.mxu0 0.0
  %1027 = vmatmul.mubr.f32.gmra.mrb[0].mxu0 %v951
  %v1028 = vpop.f32.mrb[0].mxu0
  %v1029 = vadd.f32 0.0, %v1028
  %v1030 = vpop.f32.mrb[0].mxu0
  %1031 = vdwg.mxu0
  %v1033 = vsel %vm893, %v941, 0
  %v1036 = vsel %vm893, %v942, 0
  %v1039 = vsel %vm953, %v946, 0
  %1041 = vmatprep.subr.mxu0 0.0
  %1042 = vmatpush1.msra.mxu0 %v945
  %1043 = vmatprep.subr.mxu0 0.0
  %1044 = vmatpush1.msra.mxu0 %v1039
  %1045 = vmatprep.subr.mxu0 0.0
  %1046 = vmatpush1.msra.mxu0 0.0
  %1047 = vmatprep.subr.mxu0 0.0
  %1048 = vmatpush1.msra.mxu0 0.0
  %1049 = vmatprep.subr.mxu0 0.0
  %1050 = vmatpush1.msra.mxu0 0.0
  %1051 = vmatprep.subr.mxu0 0.0
  %1052 = vmatpush1.msra.mxu0 0.0
  %1053 = vmatprep.subr.mxu0 0.0
  %1054 = vmatpush1.msra.mxu0 0.0
  %1055 = vmatprep.subr.mxu0 0.0
  %1056 = vmatpush1.msra.mxu0 0.0
  %1057 = vmatprep.subr.mxu0 0.0
  %1058 = vmatpush1.msra.mxu0 0.0
  %1059 = vmatprep.subr.mxu0 0.0
  %1060 = vmatpush1.msra.mxu0 0.0
  %1061 = vmatprep.subr.mxu0 0.0
  %1062 = vmatpush1.msra.mxu0 0.0
  %1063 = vmatprep.subr.mxu0 0.0
  %1064 = vmatpush1.msra.mxu0 0.0
  %1065 = vmatprep.subr.mxu0 0.0
  %1066 = vmatpush1.msra.mxu0 0.0
  %1067 = vmatprep.subr.mxu0 0.0
  %1068 = vmatpush1.msra.mxu0 0.0
  %1069 = vmatprep.subr.mxu0 0.0
  %1070 = vmatpush1.msra.mxu0 0.0
  %1071 = vmatprep.subr.mxu0 0.0
  %1072 = vmatpush1.msra.mxu0 0.0
  %1073 = vmatprep.subr.mxu0 0.0
  %1074 = vmatpush1.msra.mxu0 0.0
  %1075 = vmatprep.subr.mxu0 0.0
  %1076 = vmatpush1.msra.mxu0 0.0
  %1077 = vmatprep.subr.mxu0 0.0
  %1078 = vmatpush1.msra.mxu0 0.0
  %1079 = vmatprep.subr.mxu0 0.0
  %1080 = vmatpush1.msra.mxu0 0.0
  %1081 = vmatprep.subr.mxu0 0.0
  %1082 = vmatpush1.msra.mxu0 0.0
  %1083 = vmatprep.subr.mxu0 0.0
  %1084 = vmatpush1.msra.mxu0 0.0
  %1085 = vmatprep.subr.mxu0 0.0
  %1086 = vmatpush1.msra.mxu0 0.0
  %1087 = vmatprep.subr.mxu0 0.0
  %1088 = vmatpush1.msra.mxu0 0.0
  %1089 = vmatprep.subr.mxu0 0.0
  %1090 = vmatpush1.msra.mxu0 0.0
  %1091 = vmatprep.subr.mxu0 0.0
  %1092 = vmatpush1.msra.mxu0 0.0
  %1093 = vmatprep.subr.mxu0 0.0
  %1094 = vmatpush1.msra.mxu0 0.0
  %1095 = vmatprep.subr.mxu0 0.0
  %1096 = vmatpush1.msra.mxu0 0.0
  %1097 = vmatprep.subr.mxu0 0.0
  %1098 = vmatpush1.msra.mxu0 0.0
  %1099 = vmatprep.subr.mxu0 0.0
  %1100 = vmatpush1.msra.mxu0 0.0
  %1101 = vmatprep.subr.mxu0 0.0
  %1102 = vmatpush1.msra.mxu0 0.0
  %1103 = vmatprep.subr.mxu0 0.0
  %1104 = vmatpush1.msra.mxu0 0.0
  %1105 = vmatprep.mubr.f32.mxu0 0.0
  %1106 = vmatmul.mubr.f32.gmra.mrb[0].mxu0 %v1033
  %v1107 = vpop.f32.mrb[0].mxu0
  %v1108 = vadd.f32 0.0, %v1107
  %v1109 = vpop.f32.mrb[0].mxu0
  %1110 = vmatprep.mubr.f32.mxu0 0.0
  %1111 = vmatmul.mubr.f32.gmra.mrb[0].mxu0 %v1036
  %v1112 = vpop.f32.mrb[0].mxu0
  %v1113 = vadd.f32 0.0, %v1112
  %v1114 = vpop.f32.mrb[0].mxu0
  %1115 = vdwg.mxu0
  %1116 = vst.msk [vmem:[%s7] sm:$0xff] %vm52, %v1024
  %vm1117 = vcmask 254976
  %1118 = vst.msk [vmem:[%s7 + $0x8] sm:$0x3] %vm1117, %v1029
  %1119 = vst.msk [vmem:[%s7 + $0x10] sm:$0xff] %vm52, %v1108
  %1120 = vst.msk [vmem:[%s7 + $0x18] sm:$0x3] %vm1117, %v1113
  // Predicated region
  $region30: #{h_att_forward.1} parent=0 // pred_check
    _
  $region31: #{h_att_forward.1} parent=0 // pred_check_branch
    %1122 = sbr.rel (0) target = $region33
  $region32: #{h_att_forward.1} parent=0 // pred_region
    _
  $region33: #{h_att_forward.1} parent=0 // pred_fallthru
    _
  // Predicated region
  $region34: #{h_att_forward.1} parent=0 // pred_check
    _
  $region35: #{h_att_forward.1} parent=0 // pred_check_branch
    %1124 = sbr.rel (0) target = $region37
  $region36: #{h_att_forward.1} parent=0 // pred_region
    _
  $region37: #{h_att_forward.1} parent=0 // pred_fallthru
    _

</llo_original>
